<compile_context>
chip_gen: v7x
topology: tpu7x:2x2x1
jax: 0.10.0
libtpu: 0.0.40
codegen_flags: <defaults>
</compile_context>

<pallas_src>
import functools

import jax
import jax.numpy as jnp
from jax.experimental import pallas as pl
from jax.experimental.pallas import tpu as pltpu

LANE = 128      # lane width (last dim granularity)
SUBLANE = 8     # f32 sublane granularity (second-to-last dim)


def _round_up(x, m):
    return (x + m - 1) // m * m


def _cdiv(a, b):
    return -(-a // b)


def _vmem_tile_bytes(rows, cols, dtype):
    """Bytes one (rows, cols) block occupies in VMEM ((8*pack, 128) tiling)."""
    item = jnp.dtype(dtype).itemsize
    sub = SUBLANE * max(4 // item, 1)          # 8 for f32, 16 for bf16
    return _round_up(rows, sub) * _round_up(cols, LANE) * item


def dqn_kernel(x_ref, w1_ref, b1_ref, w2_ref, b2_ref, o_ref, *, out_size):
    # Layer 1: cast the f32 x tile to the MXU weight dtype (no-op for f32),
    # accumulate in f32 on the MXU, bias + ReLU in f32 on the VPU.
    xd = x_ref[...].astype(w1_ref.dtype)
    h = jnp.dot(xd, w1_ref[...], preferred_element_type=jnp.float32)
    h = jnp.maximum(h + b1_ref[...], 0.0)            # b1 is (1, hid_p) -> broadcasts
    # Layer 2: full-lane-width MXU pass against the padded w2, then slice down
    # to the logical out_size columns, add the out_size-wide bias in f32, and
    # store the unpadded (tm, out_size) tile (tiny masked vst, negligible cost).
    out = jnp.dot(h.astype(w2_ref.dtype), w2_ref[...],
                  preferred_element_type=jnp.float32)
    o_ref[...] = (out[:, :out_size] + b2_ref[...]).astype(o_ref.dtype)


def prepare_dqn_params(w1, b1, w2, b2, compute_dtype=jnp.bfloat16):
    """One-time packing of PyTorch-convention weights.

    w1: [hidden, in], b1: [hidden], w2: [out, hidden], b2: [out].
    w1 is transposed to [in, hid_p] (NO lane padding of the x contraction dim),
    w2 to [hid_p, out_p] (hidden/output lanes zero-padded to 128, mathematically
    inert: relu(0)=0, zero weight rows/cols), b2 stays at logical out_size width.
    Done once at init time so the hot forward path never repacks weights in HBM.
    """
    hidden, in_size = w1.shape
    out_size = w2.shape[0]
    hid_p = _round_up(hidden, LANE)
    out_p = _round_up(out_size, LANE)

    w1_t = jnp.zeros((in_size, hid_p), compute_dtype)
    w1_t = w1_t.at[:, :hidden].set(w1.T.astype(compute_dtype))
    b1_p = jnp.zeros((1, hid_p), jnp.float32).at[0, :hidden].set(b1.astype(jnp.float32))
    w2_t = jnp.zeros((hid_p, out_p), compute_dtype)
    w2_t = w2_t.at[:hidden, :out_size].set(w2.T.astype(compute_dtype))
    b2_r = b2.astype(jnp.float32).reshape(1, out_size)

    return {
        "w1": w1_t, "b1": b1_p, "w2": w2_t, "b2": b2_r,
        "in_size": in_size, "out_size": out_size,
    }


def dqn_forward(x, params, *, block_b=1024):
    """x: [B, in_size].  Returns [B, out_size] in x.dtype.

    The batch axis is gridded with tm-row tiles (sublane multiple, capped at
    ceil(B/2) so large batches split across both v7x TensorCores); x and the
    output are both unpadded, weights/biases stay VMEM-resident via constant
    index_maps, and the ragged last batch tile is handled by masked writes.
    """
    B, in_size = x.shape
    assert in_size == params["in_size"]
    w1, b1, w2, b2 = params["w1"], params["b1"], params["w2"], params["b2"]
    hid_p = w1.shape[1]
    out_p = w2.shape[1]
    out_size = params["out_size"]
    cdt = w1.dtype

    # Batch tile: multiple of the x sublane granule (8 for f32 x, 16 for bf16 x),
    # big enough to amortise the ~0.35us per-grid-step overhead, and capped at
    # ceil(B/2) so the grid has >= 2 steps for megacore sharding on v7x.
    x_item = jnp.dtype(x.dtype).itemsize
    sub = SUBLANE * max(4 // x_item, 1)
    if B <= sub:
        tm = B                                     # single full-batch block
    else:
        tm = _round_up(min(block_b, _cdiv(B, 2)), sub)
    grid_m = _cdiv(B, tm)

    # Honest VMEM budget: Pallas double-buffers every input block (even the
    # constant-index weights/biases); add headroom for the f32 intermediates
    # (tm x hid_p activations) and compiler temporaries.  Tiny vs 64 MiB (v7x).
    vmem_bytes = int(
        2 * (_vmem_tile_bytes(tm, in_size, x.dtype)          # x tile
             + _vmem_tile_bytes(in_size, hid_p, cdt)          # w1 (resident)
             + _vmem_tile_bytes(1, hid_p, jnp.float32)        # b1
             + _vmem_tile_bytes(hid_p, out_p, cdt)            # w2 (resident)
             + _vmem_tile_bytes(1, out_size, jnp.float32)     # b2
             + _vmem_tile_bytes(tm, out_size, x.dtype))       # out tile
        + (8 << 20)                                            # headroom
    )

    cost = pl.CostEstimate(
        flops=2 * grid_m * tm * (in_size * hid_p + hid_p * out_p),
        transcendentals=0,
        bytes_accessed=int(x.size * x_item
                           + w1.size * jnp.dtype(cdt).itemsize
                           + w2.size * jnp.dtype(cdt).itemsize
                           + (b1.size + b2.size) * 4
                           + B * out_size * x_item),
    )

    return pl.pallas_call(
        functools.partial(dqn_kernel, out_size=out_size),
        out_shape=jax.ShapeDtypeStruct((B, out_size), x.dtype),
        grid=(grid_m,),
        in_specs=[
            pl.BlockSpec((tm, in_size), lambda i: (i, 0)),      # x: batch-tiled, unpadded
            pl.BlockSpec((in_size, hid_p), lambda i: (0, 0)),   # w1: VMEM-resident
            pl.BlockSpec((1, hid_p), lambda i: (0, 0)),         # b1: VMEM-resident
            pl.BlockSpec((hid_p, out_p), lambda i: (0, 0)),     # w2: VMEM-resident
            pl.BlockSpec((1, out_size), lambda i: (0, 0)),      # b2: VMEM-resident
        ],
        out_specs=pl.BlockSpec((tm, out_size), lambda i: (i, 0)),  # unpadded output
        compiler_params=pltpu.CompilerParams(
            dimension_semantics=("parallel",),
            vmem_limit_bytes=vmem_bytes,
        ),
        cost_estimate=cost,
    )(x, w1, b1, w2, b2)


def init_dqn_params(key, input_size, hidden_size, output_size):
    """Deterministic init mimicking PyTorch nn.Linear default (uniform +/- 1/sqrt(fan_in))."""
    k1, k2, k3, k4 = jax.random.split(key, 4)
    bound1 = 1.0 / (input_size ** 0.5)
    bound2 = 1.0 / (hidden_size ** 0.5)
    w1 = jax.random.uniform(k1, (hidden_size, input_size), jnp.float32, -bound1, bound1)
    b1 = jax.random.uniform(k2, (hidden_size,), jnp.float32, -bound1, bound1)
    w2 = jax.random.uniform(k3, (output_size, hidden_size), jnp.float32, -bound2, bound2)
    b2 = jax.random.uniform(k4, (output_size,), jnp.float32, -bound2, bound2)
    return w1, b1, w2, b2


if __name__ == "__main__":
    # Small shapes consistent with a Snake DQN: 16 state features, 32 hidden
    # units, 4 actions, batch of 2.  (For throughput, callers should batch many
    # environment states — the kernel grids over the batch axis.)
    B, input_size, hidden_size, output_size = 2, 16, 32, 4

    key = jax.random.PRNGKey(0)
    kx, kp = jax.random.split(key)
    x = jax.random.normal(kx, (B, input_size), jnp.float32)
    w1, b1, w2, b2 = init_dqn_params(kp, input_size, hidden_size, output_size)

    def ref_forward(xv):
        h = jnp.maximum(
            jnp.dot(xv, w1.T, precision=jax.lax.Precision.HIGHEST) + b1, 0.0)
        return jnp.dot(h, w2.T, precision=jax.lax.Precision.HIGHEST) + b2

    # f32-weight path: exact math up to MXU pass decomposition.
    params_f32 = prepare_dqn_params(w1, b1, w2, b2, compute_dtype=jnp.float32)
    out = jax.block_until_ready(dqn_forward(x, params_f32))
    ref = ref_forward(x)
    assert out.shape == (B, output_size)
    assert jnp.allclose(out, ref, atol=2e-2, rtol=2e-2)

    # Default bf16-weight path (MXU-native on v6e/v7x); f32 epilogue/accumulation.
    params_bf16 = prepare_dqn_params(w1, b1, w2, b2)
    out_bf = jax.block_until_ready(dqn_forward(x, params_bf16))
    assert out_bf.shape == (B, output_size)
    assert jnp.allclose(out_bf, ref, atol=5e-2, rtol=5e-2)

    # Larger batch exercises the multi-step grid (>=2 tiles for v7x megacore)
    # and the ragged (masked) last batch tile.
    B2 = 600
    x2 = jax.random.normal(jax.random.PRNGKey(1), (B2, input_size), jnp.float32)
    out2 = jax.block_until_ready(dqn_forward(x2, params_f32))
    ref2 = ref_forward(x2)
    assert out2.shape == (B2, output_size)
    assert jnp.allclose(out2, ref2, atol=2e-2, rtol=2e-2)

    print("KERNEL_OK")
</pallas_src>

<mosaic_0001>
module attributes {stable_mosaic.version = 11 : i64} {
  func.func @dqn_kernel(%arg0: i32, %arg1: memref<2x16xf32, #tpu.memory_space<vmem>>, %arg2: memref<16x128xf32, #tpu.memory_space<vmem>>, %arg3: memref<1x128xf32, #tpu.memory_space<vmem>>, %arg4: memref<128x128xf32, #tpu.memory_space<vmem>>, %arg5: memref<1x4xf32, #tpu.memory_space<vmem>>, %arg6: memref<2x4xf32, #tpu.memory_space<vmem>>) attributes {dimension_semantics = [#tpu.dimension_semantics<parallel>], iteration_bounds = array<i64: 1>, scalar_prefetch = 0 : i64, scratch_operands = 0 : i64, tpu.core_type = #tpu.core_type<tc>, window_params = [{transform_indices = @transform_0, window_bounds = array<i64: 2, 16>}, {pipeline_mode = #tpu.pipeline_mode<synchronous>, transform_indices = @transform_1, window_bounds = array<i64: 16, 128>}, {pipeline_mode = #tpu.pipeline_mode<synchronous>, transform_indices = @transform_2, window_bounds = array<i64: 1, 128>}, {pipeline_mode = #tpu.pipeline_mode<synchronous>, transform_indices = @transform_3, window_bounds = array<i64: 128, 128>}, {pipeline_mode = #tpu.pipeline_mode<synchronous>, transform_indices = @transform_4, window_bounds = array<i64: 1, 4>}, {transform_indices = @transform_5, window_bounds = array<i64: 2, 4>}]} {
    %c0 = arith.constant 0 : index
    %c0_0 = arith.constant 0 : index
    %0 = vector.load %arg1[%c0, %c0_0] : memref<2x16xf32, #tpu.memory_space<vmem>>, vector<2x16xf32>
    %c0_1 = arith.constant 0 : index
    %c0_2 = arith.constant 0 : index
    %1 = vector.load %arg2[%c0_1, %c0_2] : memref<16x128xf32, #tpu.memory_space<vmem>>, vector<16x128xf32>
    %cst = arith.constant dense<0.000000e+00> : vector<2x128xf32>
    %2 = tpu.matmul %0, %1, %cst {dimension_numbers = #tpu.dot_dimension_numbers<[1], [0], [0], [1], [0, 0, 1, 1], [], []>} : vector<2x16xf32>, vector<16x128xf32>, vector<2x128xf32> -> vector<2x128xf32>
    %c0_3 = arith.constant 0 : index
    %c0_4 = arith.constant 0 : index
    %3 = vector.load %arg3[%c0_3, %c0_4] : memref<1x128xf32, #tpu.memory_space<vmem>>, vector<1x128xf32>
    %4 = vector.broadcast %3 : vector<1x128xf32> to vector<2x128xf32>
    %5 = arith.addf %2, %4 : vector<2x128xf32>
    %cst_5 = arith.constant 0.000000e+00 : f32
    %6 = vector.broadcast %cst_5 : f32 to vector<2x128xf32>
    %7 = arith.maximumf %5, %6 : vector<2x128xf32>
    %c0_6 = arith.constant 0 : index
    %c0_7 = arith.constant 0 : index
    %8 = vector.load %arg4[%c0_6, %c0_7] : memref<128x128xf32, #tpu.memory_space<vmem>>, vector<128x128xf32>
    %cst_8 = arith.constant dense<0.000000e+00> : vector<2x128xf32>
    %9 = tpu.matmul %7, %8, %cst_8 {dimension_numbers = #tpu.dot_dimension_numbers<[1], [0], [0], [1], [0, 0, 1, 1], [], []>} : vector<2x128xf32>, vector<128x128xf32>, vector<2x128xf32> -> vector<2x128xf32>
    %10 = vector.extract_strided_slice %9 {offsets = [0, 0], sizes = [2, 4], strides = [1, 1]} : vector<2x128xf32> to vector<2x4xf32>
    %c0_9 = arith.constant 0 : index
    %c0_10 = arith.constant 0 : index
    %11 = vector.load %arg5[%c0_9, %c0_10] : memref<1x4xf32, #tpu.memory_space<vmem>>, vector<1x4xf32>
    %12 = vector.broadcast %11 : vector<1x4xf32> to vector<2x4xf32>
    %13 = arith.addf %10, %12 : vector<2x4xf32>
    %c0_11 = arith.constant 0 : index
    %c0_12 = arith.constant 0 : index
    %14 = vector.load %arg6[%c0_11, %c0_12] : memref<2x4xf32, #tpu.memory_space<vmem>>, vector<2x4xf32>
    tpu.vector_store %arg6[%c0_11, %c0_12], %13 {strides = array<i32>} : memref<2x4xf32, #tpu.memory_space<vmem>>, vector<2x4xf32>,
    return
  }
  func.func @transform_0(%arg0: i32) -> (i32, i32) {
    %c0_i32 = arith.constant 0 : i32
    %c0_i32_0 = arith.constant 0 : i32
    return %arg0, %c0_i32 : i32, i32
  }
  func.func @transform_1(%arg0: i32) -> (i32, i32) {
    %c0_i32 = arith.constant 0 : i32
    %c0_i32_0 = arith.constant 0 : i32
    %c0_i32_1 = arith.constant 0 : i32
    return %c0_i32, %c0_i32_0 : i32, i32
  }
  func.func @transform_2(%arg0: i32) -> (i32, i32) {
    %c0_i32 = arith.constant 0 : i32
    %c0_i32_0 = arith.constant 0 : i32
    %c0_i32_1 = arith.constant 0 : i32
    return %c0_i32, %c0_i32_0 : i32, i32
  }
  func.func @transform_3(%arg0: i32) -> (i32, i32) {
    %c0_i32 = arith.constant 0 : i32
    %c0_i32_0 = arith.constant 0 : i32
    %c0_i32_1 = arith.constant 0 : i32
    return %c0_i32, %c0_i32_0 : i32, i32
  }
  func.func @transform_4(%arg0: i32) -> (i32, i32) {
    %c0_i32 = arith.constant 0 : i32
    %c0_i32_0 = arith.constant 0 : i32
    %c0_i32_1 = arith.constant 0 : i32
    return %c0_i32, %c0_i32_0 : i32, i32
  }
  func.func @transform_5(%arg0: i32) -> (i32, i32) {
    %c0_i32 = arith.constant 0 : i32
    %c0_i32_0 = arith.constant 0 : i32
    return %arg0, %c0_i32 : i32, i32
  }
}

</mosaic_0001>

<llo_original>
// kernel: tpu_custom_call.1
$region0: #{tpu_custom_call.1}
  #allocation0 [shape = 'u32[]', space=smem, size = 0x4, offset = 0x4, fixed_abs, tag = 'smem constant byte address 0x4 - core index']
  #allocation1 [shape = 'u32[144,128]{1,0:T(1,128)}', space=vmem, size = 0x12000, scoped, tag = 'internal scratch']
  %s0 = inlined_call_operand.hbm [shape: f32[2,16], index: 0, kind: input, shape index: {}]
  %s1 = inlined_call_operand.hbm [shape: f32[16,128], index: 1, kind: input, shape index: {}]
  %s2 = inlined_call_operand.vmem [shape: f32[1,128], index: 2, kind: input, shape index: {}]
  %s3 = inlined_call_operand.hbm [shape: f32[128,128], index: 3, kind: input, shape index: {}]
  %s4 = inlined_call_operand.vmem [shape: f32[1,4], index: 4, kind: input, shape index: {}]
  %s5 = inlined_call_operand.hbm [shape: f32[2,4], index: 5, kind: output, shape index: {}]
  %s6 = sld [smem:[#allocation0]]
  $region42: #{tpu_custom_call.1} parent=0
    _
  %s8 = ssub.s32 1, %s6
  %s9 = scalar_select 0, %s8, %s6
  $region1: #{tpu_custom_call.1} parent=0
    #allocation2 [shape = 'u8[1024]{0}', space=vmem, size = 0x400, scoped, tag = 'input window, operand 0, single buffered']
    #allocation3 [shape = 's32[1]{0}', space=sflag, size = 0x4, scoped, tag = 'scoped memory for tpu_custom_call.1']
    #allocation4 [shape = 's32[1]{0}', space=sflag, size = 0x4, scoped, tag = 'scoped memory for tpu_custom_call.1']
    #allocation5 [shape = 'u8[8192]{0}', space=vmem, size = 0x2000, scoped, tag = 'input window, operand 1, single buffered']
    #allocation6 [shape = 's32[1]{0}', space=sflag, size = 0x4, scoped, tag = 'scoped memory for tpu_custom_call.1']
    #allocation7 [shape = 'u8[65536]{0}', space=vmem, size = 0x10000, scoped, tag = 'input window, operand 3, single buffered']
    #allocation8 [shape = 'u8[1024]{0}', space=vmem, size = 0x400, scoped, tag = 'output window, operand 0, single buffered']
    %10 = vsyncpa [#allocation3], 0
    %11 = vsyncpa [#allocation6], 0
    %12 = vsyncpa [#allocation4], 0
    // Predicated region
    $region2: #{tpu_custom_call.1} parent=1 // pred_check
      _
    $region3: #{tpu_custom_call.1} parent=1 // pred_check_branch
      %14 = sbr.rel (0) target = $region5
    $region4: #{tpu_custom_call.1} parent=1 // pred_region
      %s16 = ssub.s32 32, 32
      %17 = vsyncadd [#allocation3], %s16
      %s19 = sshll.u32 [#allocation2], 4
      %s20 = int_to_ptr.vmem [resolvable:$true] %s19
      %22 = dma.hbm_to_vmem [thread:$0]  %s0, 32, %s20, [#allocation3]
    $region5: #{tpu_custom_call.1} parent=1 // pred_fallthru
      _
    // Predicated region
    $region6: #{tpu_custom_call.1} parent=1 // pred_check
      _
    $region7: #{tpu_custom_call.1} parent=1 // pred_check_branch
      %24 = sbr.rel (0) target = $region9
    $region8: #{tpu_custom_call.1} parent=1 // pred_region
      %s26 = ssub.s32 256, 256
      %27 = vsyncadd [#allocation6], %s26
      %s28 = sshll.u32 [#allocation5], 4
      %s29 = int_to_ptr.vmem [resolvable:$true] %s28
      %34 = dma.hbm_to_vmem [thread:$0]  %s1, 256, %s29, [#allocation6], 128, 128, 8
    $region9: #{tpu_custom_call.1} parent=1 // pred_fallthru
      _
    // Predicated region
    $region10: #{tpu_custom_call.1} parent=1 // pred_check
      _
    $region11: #{tpu_custom_call.1} parent=1 // pred_check_branch
      %36 = sbr.rel (0) target = $region13
    $region12: #{tpu_custom_call.1} parent=1 // pred_region
      _
    $region13: #{tpu_custom_call.1} parent=1 // pred_fallthru
      _
    // Predicated region
    $region14: #{tpu_custom_call.1} parent=1 // pred_check
      _
    $region15: #{tpu_custom_call.1} parent=1 // pred_check_branch
      %38 = sbr.rel (0) target = $region17
    $region16: #{tpu_custom_call.1} parent=1 // pred_region
      %s40 = ssub.s32 2048, 2048
      %41 = vsyncadd [#allocation6], %s40
      %s42 = sshll.u32 [#allocation7], 4
      %s43 = int_to_ptr.vmem [resolvable:$true] %s42
      %48 = dma.hbm_to_vmem [thread:$0]  %s3, 2048, %s43, [#allocation6], 128, 128, 8
    $region17: #{tpu_custom_call.1} parent=1 // pred_fallthru
      _
    // Predicated region
    $region18: #{tpu_custom_call.1} parent=1 // pred_check
      _
    $region19: #{tpu_custom_call.1} parent=1 // pred_check_branch
      %50 = sbr.rel (0) target = $region21
    $region20: #{tpu_custom_call.1} parent=1 // pred_region
      _
    $region21: #{tpu_custom_call.1} parent=1 // pred_fallthru
      _
    // Predicated region
    $region22: #{tpu_custom_call.1} parent=1 // pred_check
      _
    $region23: #{tpu_custom_call.1} parent=1 // pred_check_branch
      %52 = sbr.rel (0) target = $region25
    $region24: #{tpu_custom_call.1} parent=1 // pred_region
      %53 = dma.done [#allocation3], 32
    $region25: #{tpu_custom_call.1} parent=1 // pred_fallthru
      _
    // Predicated region
    $region26: #{tpu_custom_call.1} parent=1 // pred_check
      _
    $region27: #{tpu_custom_call.1} parent=1 // pred_check_branch
      %55 = sbr.rel (0) target = $region29
    $region28: #{tpu_custom_call.1} parent=1 // pred_region
      %56 = dma.done [#allocation6], 256
    $region29: #{tpu_custom_call.1} parent=1 // pred_fallthru
      _
    // Predicated region
    $region30: #{tpu_custom_call.1} parent=1 // pred_check
      _
    $region31: #{tpu_custom_call.1} parent=1 // pred_check_branch
      %58 = sbr.rel (0) target = $region33
    $region32: #{tpu_custom_call.1} parent=1 // pred_region
      %59 = dma.done [#allocation6], 2048
    $region33: #{tpu_custom_call.1} parent=1 // pred_fallthru
      _
    %v60 = vld [vmem:[#allocation2] sm:$0x3]
    %v61 = vld [vmem:[#allocation5] sm:$0xff]
    %v62 = vld [vmem:[#allocation5 + $0x8] sm:$0xff]
    %v63 = vld [vmem:[%s2] sm:$0x1]
    %v65 = vlaneseq
    %v66 = vshrl.u32 %v65, 7
    %v67 = vsub.s32 0, %v66
    %v68 = vrot.slane %v63, %v67
    %vm70 = vcmask 130048
    %v72 = vsel %vm70, %v60, 0
    %74 = vmatprep.subr.mxu0 0.0
    %75 = vmatpush1.msra.mxu0 %v61
    %76 = vmatprep.subr.mxu0 0.0
    %77 = vmatpush1.msra.mxu0 %v62
    %78 = vmatprep.subr.mxu0 0.0
    %79 = vmatpush1.msra.mxu0 0.0
    %80 = vmatprep.subr.mxu0 0.0
    %81 = vmatpush1.msra.mxu0 0.0
    %82 = vmatprep.subr.mxu0 0.0
    %83 = vmatpush1.msra.mxu0 0.0
    %84 = vmatprep.subr.mxu0 0.0
    %85 = vmatpush1.msra.mxu0 0.0
    %86 = vmatprep.subr.mxu0 0.0
    %87 = vmatpush1.msra.mxu0 0.0
    %88 = vmatprep.subr.mxu0 0.0
    %89 = vmatpush1.msra.mxu0 0.0
    %90 = vmatprep.subr.mxu0 0.0
    %91 = vmatpush1.msra.mxu0 0.0
    %92 = vmatprep.subr.mxu0 0.0
    %93 = vmatpush1.msra.mxu0 0.0
    %94 = vmatprep.subr.mxu0 0.0
    %95 = vmatpush1.msra.mxu0 0.0
    %96 = vmatprep.subr.mxu0 0.0
    %97 = vmatpush1.msra.mxu0 0.0
    %98 = vmatprep.subr.mxu0 0.0
    %99 = vmatpush1.msra.mxu0 0.0
    %100 = vmatprep.subr.mxu0 0.0
    %101 = vmatpush1.msra.mxu0 0.0
    %102 = vmatprep.subr.mxu0 0.0
    %103 = vmatpush1.msra.mxu0 0.0
    %104 = vmatprep.subr.mxu0 0.0
    %105 = vmatpush1.msra.mxu0 0.0
    %106 = vmatprep.subr.mxu0 0.0
    %107 = vmatpush1.msra.mxu0 0.0
    %108 = vmatprep.subr.mxu0 0.0
    %109 = vmatpush1.msra.mxu0 0.0
    %110 = vmatprep.subr.mxu0 0.0
    %111 = vmatpush1.msra.mxu0 0.0
    %112 = vmatprep.subr.mxu0 0.0
    %113 = vmatpush1.msra.mxu0 0.0
    %114 = vmatprep.subr.mxu0 0.0
    %115 = vmatpush1.msra.mxu0 0.0
    %116 = vmatprep.subr.mxu0 0.0
    %117 = vmatpush1.msra.mxu0 0.0
    %118 = vmatprep.subr.mxu0 0.0
    %119 = vmatpush1.msra.mxu0 0.0
    %120 = vmatprep.subr.mxu0 0.0
    %121 = vmatpush1.msra.mxu0 0.0
    %122 = vmatprep.subr.mxu0 0.0
    %123 = vmatpush1.msra.mxu0 0.0
    %124 = vmatprep.subr.mxu0 0.0
    %125 = vmatpush1.msra.mxu0 0.0
    %126 = vmatprep.subr.mxu0 0.0
    %127 = vmatpush1.msra.mxu0 0.0
    %128 = vmatprep.subr.mxu0 0.0
    %129 = vmatpush1.msra.mxu0 0.0
    %130 = vmatprep.subr.mxu0 0.0
    %131 = vmatpush1.msra.mxu0 0.0
    %132 = vmatprep.subr.mxu0 0.0
    %133 = vmatpush1.msra.mxu0 0.0
    %134 = vmatprep.subr.mxu0 0.0
    %135 = vmatpush1.msra.mxu0 0.0
    %136 = vmatprep.subr.mxu0 0.0
    %137 = vmatpush1.msra.mxu0 0.0
    %138 = vmatprep.mubr.f32.mxu0 0.0
    %139 = vmatmul.mubr.f32.gmra.mrb[0].mxu0 %v72
    %v140 = vpop.f32.mrb[0].mxu0
    %v141 = vadd.f32 %v68, %v140
    %v142 = vpop.f32.mrb[0].mxu0
    %143 = vdwg.mxu0
    %v144 = vmax.f32 %v141, 0.0
    %v145 = vld [vmem:[#allocation7] sm:$0xff]
    %v146 = vld [vmem:[#allocation7 + $0x8] sm:$0xff]
    %v147 = vld [vmem:[#allocation7 + $0x10] sm:$0xff]
    %v148 = vld [vmem:[#allocation7 + $0x18] sm:$0xff]
    %v149 = vld [vmem:[#allocation7 + $0x20] sm:$0xff]
    %v150 = vld [vmem:[#allocation7 + $0x28] sm:$0xff]
    %v151 = vld [vmem:[#allocation7 + $0x30] sm:$0xff]
    %v152 = vld [vmem:[#allocation7 + $0x38] sm:$0xff]
    %v153 = vld [vmem:[#allocation7 + $0x40] sm:$0xff]
    %v154 = vld [vmem:[#allocation7 + $0x48] sm:$0xff]
    %v155 = vld [vmem:[#allocation7 + $0x50] sm:$0xff]
    %v156 = vld [vmem:[#allocation7 + $0x58] sm:$0xff]
    %v157 = vld [vmem:[#allocation7 + $0x60] sm:$0xff]
    %v158 = vld [vmem:[#allocation7 + $0x68] sm:$0xff]
    %v159 = vld [vmem:[#allocation7 + $0x70] sm:$0xff]
    %v160 = vld [vmem:[#allocation7 + $0x78] sm:$0xff]
    %161 = vmatprep.subr.mxu0 0.0
    %162 = vmatpush1.msra.mxu0 %v145
    %163 = vmatprep.subr.mxu0 0.0
    %164 = vmatpush1.msra.mxu0 %v146
    %165 = vmatprep.subr.mxu0 0.0
    %166 = vmatpush1.msra.mxu0 %v147
    %167 = vmatprep.subr.mxu0 0.0
    %168 = vmatpush1.msra.mxu0 %v148
    %169 = vmatprep.subr.mxu0 0.0
    %170 = vmatpush1.msra.mxu0 %v149
    %171 = vmatprep.subr.mxu0 0.0
    %172 = vmatpush1.msra.mxu0 %v150
    %173 = vmatprep.subr.mxu0 0.0
    %174 = vmatpush1.msra.mxu0 %v151
    %175 = vmatprep.subr.mxu0 0.0
    %176 = vmatpush1.msra.mxu0 %v152
    %177 = vmatprep.subr.mxu0 0.0
    %178 = vmatpush1.msra.mxu0 %v153
    %179 = vmatprep.subr.mxu0 0.0
    %180 = vmatpush1.msra.mxu0 %v154
    %181 = vmatprep.subr.mxu0 0.0
    %182 = vmatpush1.msra.mxu0 %v155
    %183 = vmatprep.subr.mxu0 0.0
    %184 = vmatpush1.msra.mxu0 %v156
    %185 = vmatprep.subr.mxu0 0.0
    %186 = vmatpush1.msra.mxu0 %v157
    %187 = vmatprep.subr.mxu0 0.0
    %188 = vmatpush1.msra.mxu0 %v158
    %189 = vmatprep.subr.mxu0 0.0
    %190 = vmatpush1.msra.mxu0 %v159
    %191 = vmatprep.subr.mxu0 0.0
    %192 = vmatpush1.msra.mxu0 %v160
    %193 = vmatprep.subr.mxu0 0.0
    %194 = vmatpush1.msra.mxu0 0.0
    %195 = vmatprep.subr.mxu0 0.0
    %196 = vmatpush1.msra.mxu0 0.0
    %197 = vmatprep.subr.mxu0 0.0
    %198 = vmatpush1.msra.mxu0 0.0
    %199 = vmatprep.subr.mxu0 0.0
    %200 = vmatpush1.msra.mxu0 0.0
    %201 = vmatprep.subr.mxu0 0.0
    %202 = vmatpush1.msra.mxu0 0.0
    %203 = vmatprep.subr.mxu0 0.0
    %204 = vmatpush1.msra.mxu0 0.0
    %205 = vmatprep.subr.mxu0 0.0
    %206 = vmatpush1.msra.mxu0 0.0
    %207 = vmatprep.subr.mxu0 0.0
    %208 = vmatpush1.msra.mxu0 0.0
    %209 = vmatprep.subr.mxu0 0.0
    %210 = vmatpush1.msra.mxu0 0.0
    %211 = vmatprep.subr.mxu0 0.0
    %212 = vmatpush1.msra.mxu0 0.0
    %213 = vmatprep.subr.mxu0 0.0
    %214 = vmatpush1.msra.mxu0 0.0
    %215 = vmatprep.subr.mxu0 0.0
    %216 = vmatpush1.msra.mxu0 0.0
    %217 = vmatprep.subr.mxu0 0.0
    %218 = vmatpush1.msra.mxu0 0.0
    %219 = vmatprep.subr.mxu0 0.0
    %220 = vmatpush1.msra.mxu0 0.0
    %221 = vmatprep.subr.mxu0 0.0
    %222 = vmatpush1.msra.mxu0 0.0
    %223 = vmatprep.subr.mxu0 0.0
    %224 = vmatpush1.msra.mxu0 0.0
    %225 = vmatprep.mubr.f32.mxu0 0.0
    %226 = vmatmul.mubr.f32.gmra.mrb[0].mxu0 %v144
    %v227 = vpop.f32.mrb[0].mxu0
    %v228 = vadd.f32 0.0, %v227
    %v229 = vpop.f32.mrb[0].mxu0
    %230 = vdwg.mxu0
    %v231 = vld [vmem:[%s4] sm:$0x1]
    %v233 = vlaneseq
    %v234 = vshrl.u32 %v233, 7
    %v235 = vsub.s32 0, %v234
    %v236 = vrot.slane %v231, %v235
    %v238 = vadd.f32 %v228, %v236
    %vm239 = vcmask 25600
    %240 = vst.msk [vmem:[#allocation8] sm:$0x3] %vm239, %v238
    // Predicated region
    $region34: #{tpu_custom_call.1} parent=1 // pred_check
      _
    $region35: #{tpu_custom_call.1} parent=1 // pred_check_branch
      %242 = sbr.rel (0) target = $region37
    $region36: #{tpu_custom_call.1} parent=1 // pred_region
      %s244 = ssub.s32 32, 32
      %245 = vsyncadd [#allocation4], %s244
      %s247 = sshll.u32 [#allocation8], 4
      %s248 = int_to_ptr.vmem [resolvable:$true] %s247
      %250 = dma.vmem_to_hbm [thread:$0]  %s248, 32, %s5, [#allocation4]
    $region37: #{tpu_custom_call.1} parent=1 // pred_fallthru
      _
    // Predicated region
    $region38: #{tpu_custom_call.1} parent=1 // pred_check
      _
    $region39: #{tpu_custom_call.1} parent=1 // pred_check_branch
      %252 = sbr.rel (0) target = $region41
    $region40: #{tpu_custom_call.1} parent=1 // pred_region
      %253 = dma.done [#allocation4], 32
    $region41: #{tpu_custom_call.1} parent=1 // pred_fallthru
      _
    %254 = vsyncpa [#allocation3], 1
    %255 = vsyncpa [#allocation6], 1
    %256 = vsyncpa [#allocation4], 1

</llo_original>
